<compile_context>
chip_gen: v7x
topology: tpu7x:2x2x1
jax: 0.10.0
libtpu: 0.0.40
codegen_flags: <defaults>
</compile_context>

<pallas_src>
import functools

import jax
import jax.numpy as jnp
from jax import lax
from jax.experimental import pallas as pl
from jax.experimental.pallas import tpu as pltpu


def _round_up(x, m):
    return ((x + m - 1) // m) * m


def _lightgcn_kernel(edge_ref, emb_t_ref, out_ref, *, num_layers):
    """LightGCN propagation on a dense symmetric-normalized adjacency.

    edge_ref : (2, E_pad) int32 VMEM  -- undirected edges (padding = repeated edge 0)
    emb_t_ref: (D_pad, N_pad) f32 VMEM -- transposed [disease; drug] embeddings
    out_ref  : (D_pad, N_pad) f32 VMEM -- transposed mean over (num_layers+1) hops
    """
    E = edge_ref.shape[1]
    N = emb_t_ref.shape[1]

    e_src = edge_ref[0:1, :]                                    # (1, E) int32
    e_dst = edge_ref[1:2, :]                                    # (1, E) int32
    row_ids = lax.broadcasted_iota(jnp.int32, (N, E), 0)

    # One-hot node membership per edge endpoint -- bf16 is exact for 0/1 and
    # doubles MXU throughput; accumulation stays f32.
    src_oh = (row_ids == e_src).astype(jnp.bfloat16)            # (N, E)
    dst_oh = (row_ids == e_dst).astype(jnp.bfloat16)            # (N, E)

    # count[i, j] = #edges (i -> j).  Reverse direction is just the transpose,
    # so only ONE N*E*N matmul is needed; duplicate / padded edges collapse via
    # the >0 threshold (matches torch's `adj[...] = 1` scatter semantics).
    dn = (((1,), (1,)), ((), ()))                               # contract over E
    a_fwd = lax.dot_general(src_oh, dst_oh, dn,
                            preferred_element_type=jnp.float32)  # (N, N)
    count = a_fwd + jnp.transpose(a_fwd)                         # XLU transpose, no 2nd matmul
    adj = (count > 0.0).astype(jnp.float32)                      # (N, N), symmetric 0/1

    # Single degree reduction (adj symmetric => col sums == row sums); rsqrt on EUP.
    deg = jnp.sum(adj, axis=0, keepdims=True)                    # (1, N)
    d = lax.rsqrt(deg + 1e-12)                                   # (1, N)

    # Fold the right-hand D^-1/2 into the adjacency once: A_half = A * diag(d).
    # Then, since norm_adj = D^-1/2 A D^-1/2 is symmetric,
    #   (norm_adj @ x)^T = (x^T * d) @ A_half
    # i.e. one lane-broadcast scale + one MXU matmul per layer.
    a_half = adj * d                                             # (N, N)

    cur = emb_t_ref[...]                                         # (D, N) f32
    acc = cur

    def step(cur):
        return jnp.dot(cur * d, a_half, preferred_element_type=jnp.float32)

    if num_layers <= 4:
        # small, static unroll
        for _ in range(num_layers):
            cur = step(cur)
            acc = acc + cur
    else:
        def body(_, carry):
            c, a = carry
            c = step(c)
            return c, a + c
        cur, acc = lax.fori_loop(0, num_layers, body, (cur, acc))

    out_ref[...] = acc * (1.0 / float(num_layers + 1))


def lightgcn_forward(disease_embeddings, drug_embeddings, edge_index, num_layers):
    """Pallas-backed equivalent of LightGCN.forward; returns (disease_final, drug_final)."""
    disease_embeddings = jnp.asarray(disease_embeddings, jnp.float32)
    drug_embeddings = jnp.asarray(drug_embeddings, jnp.float32)
    all_emb = jnp.concatenate([disease_embeddings, drug_embeddings], axis=0)
    N, D = all_emb.shape
    E = edge_index.shape[1]

    # Pad node axis to a lane multiple (lane-dense MXU output + unmasked stores),
    # feature axis to a sublane multiple, edge axis to a lane multiple.
    N_pad = _round_up(N, 128)
    D_pad = _round_up(D, 8)
    E_pad = _round_up(E, 128)

    # Transposed embeddings (D_pad, N_pad); padded rows/cols are zero and stay zero.
    emb_t = jnp.zeros((D_pad, N_pad), jnp.float32).at[:D, :N].set(all_emb.T)

    # Pad edges by repeating edge 0 -- duplicates collapse via the >0 threshold.
    edge = edge_index.astype(jnp.int32)
    if E_pad > E:
        edge = jnp.concatenate(
            [edge, jnp.tile(edge[:, :1], (1, E_pad - E))], axis=1)

    # VMEM budget: one-hots + adjacency temporaries + (D,N) working set,
    # with ~2x headroom (default scoped VMEM is only 16/32 MiB).
    est_bytes = (2 * N_pad * E_pad * 2      # src_oh + dst_oh (bf16)
                 + N_pad * E_pad * 4        # iota (int32)
                 + 3 * N_pad * N_pad * 4    # a_fwd + adj + a_half (f32)
                 + 4 * D_pad * N_pad * 4    # emb/acc/cur + output (f32)
                 + 2 * 2 * E_pad * 4)       # edge buffers
    vmem_limit = int(min(max(2 * est_bytes, 8 * 2**20), 64 * 2**20))

    kernel = functools.partial(_lightgcn_kernel, num_layers=num_layers)
    out_t = pl.pallas_call(
        kernel,
        out_shape=jax.ShapeDtypeStruct((D_pad, N_pad), jnp.float32),
        in_specs=[
            pl.BlockSpec(memory_space=pltpu.MemorySpace.VMEM),  # edge_index (2, E_pad)
            pl.BlockSpec(memory_space=pltpu.MemorySpace.VMEM),  # emb^T     (D_pad, N_pad)
        ],
        out_specs=pl.BlockSpec(memory_space=pltpu.MemorySpace.VMEM),
        compiler_params=pltpu.CompilerParams(vmem_limit_bytes=vmem_limit),
    )(edge, emb_t)

    final = out_t[:D, :N].T                                      # (N, D)
    num_dis = disease_embeddings.shape[0]
    return final[:num_dis], final[num_dis:]


def lightgcn_reference(disease_embeddings, drug_embeddings, edge_index, num_layers):
    """Pure-JAX reference mirroring the PyTorch forward exactly."""
    all_emb = jnp.concatenate([disease_embeddings, drug_embeddings], axis=0)
    N = all_emb.shape[0]
    adj = jnp.zeros((N, N), jnp.float32)
    adj = adj.at[edge_index[0], edge_index[1]].set(1.0)
    adj = adj.at[edge_index[1], edge_index[0]].set(1.0)
    degree = adj.sum(axis=1)
    d_inv_sqrt = 1.0 / jnp.sqrt(degree + 1e-12)
    norm_adj = d_inv_sqrt[:, None] * adj * d_inv_sqrt[None, :]
    embs = [all_emb]
    cur = all_emb
    for _ in range(num_layers):
        cur = norm_adj @ cur
        embs.append(cur)
    final = jnp.stack(embs, axis=0).mean(axis=0)
    num_dis = disease_embeddings.shape[0]
    return final[:num_dis], final[num_dis:]


if __name__ == "__main__":
    key = jax.random.PRNGKey(0)
    k_dis, k_drug, k_src, k_dst = jax.random.split(key, 4)

    num_diseases = 16
    num_drugs = 16
    embedding_dim = 32
    num_layers = 2
    num_edges = 24

    # Deterministic "parameters" (stand-ins for the nn.Parameter embeddings).
    disease_embeddings = jax.random.normal(k_dis, (num_diseases, embedding_dim), jnp.float32)
    drug_embeddings = jax.random.normal(k_drug, (num_drugs, embedding_dim), jnp.float32)

    # Bipartite edges: disease ids in [0, num_diseases), drug ids offset by num_diseases.
    src = jax.random.randint(k_src, (num_edges,), 0, num_diseases, jnp.int32)
    dst = jax.random.randint(k_dst, (num_edges,), 0, num_drugs, jnp.int32) + num_diseases
    edge_index = jnp.stack([src, dst], axis=0)  # (2, E)

    dis_final, drug_final = lightgcn_forward(
        disease_embeddings, drug_embeddings, edge_index, num_layers
    )
    dis_final = jax.block_until_ready(dis_final)
    drug_final = jax.block_until_ready(drug_final)

    dis_ref, drug_ref = lightgcn_reference(
        disease_embeddings, drug_embeddings, edge_index, num_layers
    )
    assert jnp.allclose(dis_final, dis_ref, atol=1e-5, rtol=1e-5)
    assert jnp.allclose(drug_final, drug_ref, atol=1e-5, rtol=1e-5)

    print("KERNEL_OK")
</pallas_src>

<mosaic_0001>
module attributes {stable_mosaic.version = 11 : i64} {
  func.func @_lightgcn_kernel(%arg0: memref<2x128xi32, #tpu.memory_space<vmem>>, %arg1: memref<32x128xf32, #tpu.memory_space<vmem>>, %arg2: memref<32x128xf32, #tpu.memory_space<vmem>>) attributes {dimension_semantics = [], scalar_prefetch = 0 : i64, scratch_operands = 0 : i64, tpu.core_type = #tpu.core_type<tc>} {
    %c0 = arith.constant 0 : index
    %c0_0 = arith.constant 0 : index
    %0 = vector.load %arg0[%c0, %c0_0] : memref<2x128xi32, #tpu.memory_space<vmem>>, vector<1x128xi32>
    %c1 = arith.constant 1 : index
    %c0_1 = arith.constant 0 : index
    %1 = vector.load %arg0[%c1, %c0_1] : memref<2x128xi32, #tpu.memory_space<vmem>>, vector<1x128xi32>
    %2 = tpu.iota {dimensions = array<i32: 0>} : vector<128x128xi32>
    %3 = vector.broadcast %0 : vector<1x128xi32> to vector<128x128xi32>
    %4 = arith.cmpi eq, %2, %3 : vector<128x128xi32>
    %5 = arith.extui %4 : vector<128x128xi1> to vector<128x128xi32>
    %6 = arith.sitofp %5 : vector<128x128xi32> to vector<128x128xf32>
    %7 = arith.truncf %6 : vector<128x128xf32> to vector<128x128xbf16>
    %8 = vector.broadcast %1 : vector<1x128xi32> to vector<128x128xi32>
    %9 = arith.cmpi eq, %2, %8 : vector<128x128xi32>
    %10 = arith.extui %9 : vector<128x128xi1> to vector<128x128xi32>
    %11 = arith.sitofp %10 : vector<128x128xi32> to vector<128x128xf32>
    %12 = arith.truncf %11 : vector<128x128xf32> to vector<128x128xbf16>
    %cst = arith.constant dense<0.000000e+00> : vector<128x128xf32>
    %13 = tpu.matmul %7, %12, %cst {dimension_numbers = #tpu.dot_dimension_numbers<[1], [1], [0], [0], [0, 0, 1, 0], [], []>} : vector<128x128xbf16>, vector<128x128xbf16>, vector<128x128xf32> -> vector<128x128xf32>
    %14 = tpu.transpose %13, [1, 0] : vector<128x128xf32> -> vector<128x128xf32>
    %15 = arith.addf %13, %14 : vector<128x128xf32>
    %cst_2 = arith.constant 0.000000e+00 : f32
    %16 = vector.broadcast %cst_2 : f32 to vector<128x128xf32>
    %17 = arith.cmpf ogt, %15, %16 : vector<128x128xf32>
    %18 = arith.extui %17 : vector<128x128xi1> to vector<128x128xi32>
    %19 = arith.sitofp %18 : vector<128x128xi32> to vector<128x128xf32>
    %cst_3 = arith.constant dense<0.000000e+00> : vector<128xf32>
    %20 = vector.multi_reduction <add>, %19, %cst_3 [0] : vector<128x128xf32> to vector<128xf32>
    %21 = vector.shape_cast %20 : vector<128xf32> to vector<1x128xf32>
    %cst_4 = arith.constant 9.99999996E-13 : f32
    %22 = vector.broadcast %cst_4 : f32 to vector<1x128xf32>
    %23 = arith.addf %21, %22 : vector<1x128xf32>
    %24 = math.rsqrt %23 : vector<1x128xf32>
    %25 = vector.broadcast %24 : vector<1x128xf32> to vector<128x128xf32>
    %26 = arith.mulf %19, %25 : vector<128x128xf32>
    %c0_5 = arith.constant 0 : index
    %c0_6 = arith.constant 0 : index
    %27 = vector.load %arg1[%c0_5, %c0_6] : memref<32x128xf32, #tpu.memory_space<vmem>>, vector<32x128xf32>
    %28 = vector.broadcast %24 : vector<1x128xf32> to vector<32x128xf32>
    %29 = arith.mulf %27, %28 : vector<32x128xf32>
    %cst_7 = arith.constant dense<0.000000e+00> : vector<32x128xf32>
    %30 = tpu.matmul %29, %26, %cst_7 {dimension_numbers = #tpu.dot_dimension_numbers<[1], [0], [0], [1], [0, 0, 1, 1], [], []>} : vector<32x128xf32>, vector<128x128xf32>, vector<32x128xf32> -> vector<32x128xf32>
    %31 = arith.addf %27, %30 : vector<32x128xf32>
    %32 = vector.broadcast %24 : vector<1x128xf32> to vector<32x128xf32>
    %33 = arith.mulf %30, %32 : vector<32x128xf32>
    %cst_8 = arith.constant dense<0.000000e+00> : vector<32x128xf32>
    %34 = tpu.matmul %33, %26, %cst_8 {dimension_numbers = #tpu.dot_dimension_numbers<[1], [0], [0], [1], [0, 0, 1, 1], [], []>} : vector<32x128xf32>, vector<128x128xf32>, vector<32x128xf32> -> vector<32x128xf32>
    %35 = arith.addf %31, %34 : vector<32x128xf32>
    %cst_9 = arith.constant 0.333333343 : f32
    %36 = vector.broadcast %cst_9 : f32 to vector<32x128xf32>
    %37 = arith.mulf %35, %36 : vector<32x128xf32>
    %c0_10 = arith.constant 0 : index
    %c0_11 = arith.constant 0 : index
    %38 = vector.load %arg2[%c0_10, %c0_11] : memref<32x128xf32, #tpu.memory_space<vmem>>, vector<32x128xf32>
    tpu.vector_store %arg2[%c0_10, %c0_11], %37 {strides = array<i32>} : memref<32x128xf32, #tpu.memory_space<vmem>>, vector<32x128xf32>,
    return
  }
}

</mosaic_0001>

<llo_original>
// kernel: tpu_custom_call.1
$region0: #{tpu_custom_call.1}
  #allocation0 [shape = 'u32[]', space=smem, size = 0x4, offset = 0x4, fixed_abs, tag = 'smem constant byte address 0x4 - core index']
  #allocation1 [shape = 'u32[144,128]{1,0:T(1,128)}', space=vmem, size = 0x12000, scoped, tag = 'internal scratch']
  %s0 = inlined_call_operand.hbm [shape: s32[2,128], index: 0, kind: input, shape index: {}]
  %s1 = inlined_call_operand.hbm [shape: f32[32,128], index: 1, kind: input, shape index: {}]
  %s2 = inlined_call_operand.hbm [shape: f32[32,128], index: 2, kind: output, shape index: {}]
  %s3 = sld [smem:[#allocation0]]
  $region26: #{tpu_custom_call.1} parent=0
    _
  %s5 = ssub.s32 1, %s3
  %s6 = scalar_select 0, %s5, %s3
  $region1: #{tpu_custom_call.1} parent=0
    #allocation2 [shape = 'u8[1024]{0}', space=vmem, size = 0x400, scoped, tag = 'input window, operand 0, single buffered']
    #allocation3 [shape = 's32[1]{0}', space=sflag, size = 0x4, scoped, tag = 'scoped memory for tpu_custom_call.1']
    #allocation4 [shape = 's32[1]{0}', space=sflag, size = 0x4, scoped, tag = 'scoped memory for tpu_custom_call.1']
    #allocation5 [shape = 'u8[16384]{0}', space=vmem, size = 0x4000, scoped, tag = 'input window, operand 1, single buffered']
    #allocation6 [shape = 's32[1]{0}', space=sflag, size = 0x4, scoped, tag = 'scoped memory for tpu_custom_call.1']
    #allocation7 [shape = 'u8[16384]{0}', space=vmem, size = 0x4000, scoped, tag = 'output window, operand 0, single buffered']
    %7 = vsyncpa [#allocation3], 0
    %8 = vsyncpa [#allocation6], 0
    %9 = vsyncpa [#allocation4], 0
    // Predicated region
    $region2: #{tpu_custom_call.1} parent=1 // pred_check
      _
    $region3: #{tpu_custom_call.1} parent=1 // pred_check_branch
      %11 = sbr.rel (0) target = $region5
    $region4: #{tpu_custom_call.1} parent=1 // pred_region
      %s13 = ssub.s32 32, 32
      %14 = vsyncadd [#allocation3], %s13
      %s16 = sshll.u32 [#allocation2], 4
      %s17 = int_to_ptr.vmem [resolvable:$true] %s16
      %19 = dma.hbm_to_vmem [thread:$0]  %s0, 32, %s17, [#allocation3]
    $region5: #{tpu_custom_call.1} parent=1 // pred_fallthru
      _
    // Predicated region
    $region6: #{tpu_custom_call.1} parent=1 // pred_check
      _
    $region7: #{tpu_custom_call.1} parent=1 // pred_check_branch
      %21 = sbr.rel (0) target = $region9
    $region8: #{tpu_custom_call.1} parent=1 // pred_region
      %s23 = ssub.s32 512, 512
      %24 = vsyncadd [#allocation6], %s23
      %s25 = sshll.u32 [#allocation5], 4
      %s26 = int_to_ptr.vmem [resolvable:$true] %s25
      %31 = dma.hbm_to_vmem [thread:$0]  %s1, 512, %s26, [#allocation6], 128, 128, 8
    $region9: #{tpu_custom_call.1} parent=1 // pred_fallthru
      _
    // Predicated region
    $region10: #{tpu_custom_call.1} parent=1 // pred_check
      _
    $region11: #{tpu_custom_call.1} parent=1 // pred_check_branch
      %33 = sbr.rel (0) target = $region13
    $region12: #{tpu_custom_call.1} parent=1 // pred_region
      %34 = dma.done [#allocation3], 32
    $region13: #{tpu_custom_call.1} parent=1 // pred_fallthru
      _
    // Predicated region
    $region14: #{tpu_custom_call.1} parent=1 // pred_check
      _
    $region15: #{tpu_custom_call.1} parent=1 // pred_check_branch
      %36 = sbr.rel (0) target = $region17
    $region16: #{tpu_custom_call.1} parent=1 // pred_region
      %37 = dma.done [#allocation6], 512
    $region17: #{tpu_custom_call.1} parent=1 // pred_fallthru
      _
    %v39 = vld [vmem:[#allocation2] sm:$0x1]
    %v40 = vld [vmem:[#allocation2 + $0x1] sm:$0x1]
    %v41 = vlaneseq
    %v42 = vshrl.u32 %v41, 7
    %v43 = vadd.s32 %v42, 8
    %v44 = vadd.s32 %v42, 16
    %v45 = vadd.s32 %v42, 24
    %v46 = vadd.s32 %v42, 32
    %v47 = vadd.s32 %v42, 40
    %v48 = vadd.s32 %v42, 48
    %v49 = vadd.s32 %v42, 56
    %v50 = vadd.s32 %v42, 64
    %v51 = vadd.s32 %v42, 72
    %v52 = vadd.s32 %v42, 80
    %v53 = vadd.s32 %v42, 88
    %v54 = vadd.s32 %v42, 96
    %v55 = vadd.s32 %v42, 104
    %v56 = vadd.s32 %v42, 112
    %v57 = vadd.s32 %v42, 120
    %v58 = vlaneseq
    %v59 = vshrl.u32 %v58, 7
    %v60 = vsub.s32 0, %v59
    %v61 = vrot.slane %v39, %v60
    %vm62 = vcmp.eq.s32.totalorder %v42, %v61
    %vm63 = vcmp.eq.s32.totalorder %v43, %v61
    %vm64 = vcmp.eq.s32.totalorder %v44, %v61
    %vm65 = vcmp.eq.s32.totalorder %v45, %v61
    %vm66 = vcmp.eq.s32.totalorder %v46, %v61
    %vm67 = vcmp.eq.s32.totalorder %v47, %v61
    %vm68 = vcmp.eq.s32.totalorder %v48, %v61
    %vm69 = vcmp.eq.s32.totalorder %v49, %v61
    %vm70 = vcmp.eq.s32.totalorder %v50, %v61
    %vm71 = vcmp.eq.s32.totalorder %v51, %v61
    %vm72 = vcmp.eq.s32.totalorder %v52, %v61
    %vm73 = vcmp.eq.s32.totalorder %v53, %v61
    %vm74 = vcmp.eq.s32.totalorder %v54, %v61
    %vm75 = vcmp.eq.s32.totalorder %v55, %v61
    %vm76 = vcmp.eq.s32.totalorder %v56, %v61
    %vm77 = vcmp.eq.s32.totalorder %v57, %v61
    %v78 = vsel %vm62, 1, 0
    %v79 = vsel %vm63, 1, 0
    %v80 = vsel %vm64, 1, 0
    %v81 = vsel %vm65, 1, 0
    %v82 = vsel %vm66, 1, 0
    %v83 = vsel %vm67, 1, 0
    %v84 = vsel %vm68, 1, 0
    %v85 = vsel %vm69, 1, 0
    %v86 = vsel %vm70, 1, 0
    %v87 = vsel %vm71, 1, 0
    %v88 = vsel %vm72, 1, 0
    %v89 = vsel %vm73, 1, 0
    %v90 = vsel %vm74, 1, 0
    %v91 = vsel %vm75, 1, 0
    %v92 = vsel %vm76, 1, 0
    %v93 = vsel %vm77, 1, 0
    %v94 = vcvt.s32.f32 %v78
    %v95 = vcvt.s32.f32 %v79
    %v96 = vcvt.s32.f32 %v80
    %v97 = vcvt.s32.f32 %v81
    %v98 = vcvt.s32.f32 %v82
    %v99 = vcvt.s32.f32 %v83
    %v100 = vcvt.s32.f32 %v84
    %v101 = vcvt.s32.f32 %v85
    %v102 = vcvt.s32.f32 %v86
    %v103 = vcvt.s32.f32 %v87
    %v104 = vcvt.s32.f32 %v88
    %v105 = vcvt.s32.f32 %v89
    %v106 = vcvt.s32.f32 %v90
    %v107 = vcvt.s32.f32 %v91
    %v108 = vcvt.s32.f32 %v92
    %v109 = vcvt.s32.f32 %v93
    %v110 = vpack.c.bf16 %v95, %v94
    %v111 = vpack.c.bf16 %v97, %v96
    %v112 = vpack.c.bf16 %v99, %v98
    %v113 = vpack.c.bf16 %v101, %v100
    %v114 = vpack.c.bf16 %v103, %v102
    %v115 = vpack.c.bf16 %v105, %v104
    %v116 = vpack.c.bf16 %v107, %v106
    %v117 = vpack.c.bf16 %v109, %v108
    %v118 = vlaneseq
    %v119 = vshrl.u32 %v118, 7
    %v120 = vsub.s32 0, %v119
    %v121 = vrot.slane %v40, %v120
    %vm122 = vcmp.eq.s32.totalorder %v42, %v121
    %vm123 = vcmp.eq.s32.totalorder %v43, %v121
    %vm124 = vcmp.eq.s32.totalorder %v44, %v121
    %vm125 = vcmp.eq.s32.totalorder %v45, %v121
    %vm126 = vcmp.eq.s32.totalorder %v46, %v121
    %vm127 = vcmp.eq.s32.totalorder %v47, %v121
    %vm128 = vcmp.eq.s32.totalorder %v48, %v121
    %vm129 = vcmp.eq.s32.totalorder %v49, %v121
    %vm130 = vcmp.eq.s32.totalorder %v50, %v121
    %vm131 = vcmp.eq.s32.totalorder %v51, %v121
    %vm132 = vcmp.eq.s32.totalorder %v52, %v121
    %vm133 = vcmp.eq.s32.totalorder %v53, %v121
    %vm134 = vcmp.eq.s32.totalorder %v54, %v121
    %vm135 = vcmp.eq.s32.totalorder %v55, %v121
    %vm136 = vcmp.eq.s32.totalorder %v56, %v121
    %vm137 = vcmp.eq.s32.totalorder %v57, %v121
    %v138 = vsel %vm122, 1, 0
    %v139 = vsel %vm123, 1, 0
    %v140 = vsel %vm124, 1, 0
    %v141 = vsel %vm125, 1, 0
    %v142 = vsel %vm126, 1, 0
    %v143 = vsel %vm127, 1, 0
    %v144 = vsel %vm128, 1, 0
    %v145 = vsel %vm129, 1, 0
    %v146 = vsel %vm130, 1, 0
    %v147 = vsel %vm131, 1, 0
    %v148 = vsel %vm132, 1, 0
    %v149 = vsel %vm133, 1, 0
    %v150 = vsel %vm134, 1, 0
    %v151 = vsel %vm135, 1, 0
    %v152 = vsel %vm136, 1, 0
    %v153 = vsel %vm137, 1, 0
    %v154 = vcvt.s32.f32 %v138
    %v155 = vcvt.s32.f32 %v139
    %v156 = vcvt.s32.f32 %v140
    %v157 = vcvt.s32.f32 %v141
    %v158 = vcvt.s32.f32 %v142
    %v159 = vcvt.s32.f32 %v143
    %v160 = vcvt.s32.f32 %v144
    %v161 = vcvt.s32.f32 %v145
    %v162 = vcvt.s32.f32 %v146
    %v163 = vcvt.s32.f32 %v147
    %v164 = vcvt.s32.f32 %v148
    %v165 = vcvt.s32.f32 %v149
    %v166 = vcvt.s32.f32 %v150
    %v167 = vcvt.s32.f32 %v151
    %v168 = vcvt.s32.f32 %v152
    %v169 = vcvt.s32.f32 %v153
    %v170 = vpack.c.bf16 %v155, %v154
    %v171 = vpack.c.bf16 %v157, %v156
    %v172 = vpack.c.bf16 %v159, %v158
    %v173 = vpack.c.bf16 %v161, %v160
    %v174 = vpack.c.bf16 %v163, %v162
    %v175 = vpack.c.bf16 %v165, %v164
    %v176 = vpack.c.bf16 %v167, %v166
    %v177 = vpack.c.bf16 %v169, %v168
    %178 = vmatprep.subr.bf16.mxu0 0
    %179 = vmatpush1.bf16.xpose.msra.mxu0 %v170
    %180 = vmatprep.subr.bf16.mxu0 0
    %181 = vmatpush1.bf16.xpose.msra.mxu0 %v171
    %182 = vmatprep.subr.bf16.mxu0 0
    %183 = vmatpush1.bf16.xpose.msra.mxu0 %v172
    %184 = vmatprep.subr.bf16.mxu0 0
    %185 = vmatpush1.bf16.xpose.msra.mxu0 %v173
    %186 = vmatprep.subr.bf16.mxu0 0
    %187 = vmatpush1.bf16.xpose.msra.mxu0 %v174
    %188 = vmatprep.subr.bf16.mxu0 0
    %189 = vmatpush1.bf16.xpose.msra.mxu0 %v175
    %190 = vmatprep.subr.bf16.mxu0 0
    %191 = vmatpush1.bf16.xpose.msra.mxu0 %v176
    %192 = vmatprep.subr.bf16.mxu0 0
    %193 = vmatpush1.bf16.xpose.msra.mxu0 %v177
    %194 = vmatprep.subr.bf16.mxu0 0
    %195 = vmatpush1.bf16.xpose.msra.mxu0 0
    %196 = vmatprep.subr.bf16.mxu0 0
    %197 = vmatpush1.bf16.xpose.msra.mxu0 0
    %198 = vmatprep.subr.bf16.mxu0 0
    %199 = vmatpush1.bf16.xpose.msra.mxu0 0
    %200 = vmatprep.subr.bf16.mxu0 0
    %201 = vmatpush1.bf16.xpose.msra.mxu0 0
    %202 = vmatprep.subr.bf16.mxu0 0
    %203 = vmatpush1.bf16.xpose.msra.mxu0 0
    %204 = vmatprep.subr.bf16.mxu0 0
    %205 = vmatpush1.bf16.xpose.msra.mxu0 0
    %206 = vmatprep.subr.bf16.mxu0 0
    %207 = vmatpush1.bf16.xpose.msra.mxu0 0
    %208 = vmatprep.subr.bf16.mxu0 0
    %209 = vmatpush1.bf16.xpose.msra.mxu0 0
    %210 = vmatprep.mubr.bf16.mxu0 0
    %211 = vmatmul.mubr.bf16.gmra.mrb[0].mxu0 %v110
    %v212 = vpop.f32.mrb[0].mxu0
    %v213 = vadd.f32 0.0, %v212
    %v214 = vpop.f32.mrb[0].mxu0
    %v215 = vpop.f32.mrb[0].mxu0
    %v216 = vadd.f32 0.0, %v215
    %v217 = vpop.f32.mrb[0].mxu0
    %218 = vmatprep.mubr.bf16.mxu0 0
    %219 = vmatmul.mubr.bf16.gmra.mrb[0].mxu0 %v111
    %v220 = vpop.f32.mrb[0].mxu0
    %v221 = vadd.f32 0.0, %v220
    %v222 = vpop.f32.mrb[0].mxu0
    %v223 = vpop.f32.mrb[0].mxu0
    %v224 = vadd.f32 0.0, %v223
    %v225 = vpop.f32.mrb[0].mxu0
    %226 = vmatprep.mubr.bf16.mxu0 0
    %227 = vmatmul.mubr.bf16.gmra.mrb[0].mxu0 %v112
    %v228 = vpop.f32.mrb[0].mxu0
    %v229 = vadd.f32 0.0, %v228
    %v230 = vpop.f32.mrb[0].mxu0
    %v231 = vpop.f32.mrb[0].mxu0
    %v232 = vadd.f32 0.0, %v231
    %v233 = vpop.f32.mrb[0].mxu0
    %234 = vmatprep.mubr.bf16.mxu0 0
    %235 = vmatmul.mubr.bf16.gmra.mrb[0].mxu0 %v113
    %v236 = vpop.f32.mrb[0].mxu0
    %v237 = vadd.f32 0.0, %v236
    %v238 = vpop.f32.mrb[0].mxu0
    %v239 = vpop.f32.mrb[0].mxu0
    %v240 = vadd.f32 0.0, %v239
    %v241 = vpop.f32.mrb[0].mxu0
    %242 = vmatprep.mubr.bf16.mxu0 0
    %243 = vmatmul.mubr.bf16.gmra.mrb[0].mxu0 %v114
    %v244 = vpop.f32.mrb[0].mxu0
    %v245 = vadd.f32 0.0, %v244
    %v246 = vpop.f32.mrb[0].mxu0
    %v247 = vpop.f32.mrb[0].mxu0
    %v248 = vadd.f32 0.0, %v247
    %v249 = vpop.f32.mrb[0].mxu0
    %250 = vmatprep.mubr.bf16.mxu0 0
    %251 = vmatmul.mubr.bf16.gmra.mrb[0].mxu0 %v115
    %v252 = vpop.f32.mrb[0].mxu0
    %v253 = vadd.f32 0.0, %v252
    %v254 = vpop.f32.mrb[0].mxu0
    %v255 = vpop.f32.mrb[0].mxu0
    %v256 = vadd.f32 0.0, %v255
    %v257 = vpop.f32.mrb[0].mxu0
    %258 = vmatprep.mubr.bf16.mxu0 0
    %259 = vmatmul.mubr.bf16.gmra.mrb[0].mxu0 %v116
    %v260 = vpop.f32.mrb[0].mxu0
    %v261 = vadd.f32 0.0, %v260
    %v262 = vpop.f32.mrb[0].mxu0
    %v263 = vpop.f32.mrb[0].mxu0
    %v264 = vadd.f32 0.0, %v263
    %v265 = vpop.f32.mrb[0].mxu0
    %266 = vmatprep.mubr.bf16.mxu0 0
    %267 = vmatmul.mubr.bf16.gmra.mrb[0].mxu0 %v117
    %v268 = vpop.f32.mrb[0].mxu0
    %v269 = vadd.f32 0.0, %v268
    %v270 = vpop.f32.mrb[0].mxu0
    %v271 = vpop.f32.mrb[0].mxu0
    %v272 = vadd.f32 0.0, %v271
    %v273 = vpop.f32.mrb[0].mxu0
    %274 = vdwg.mxu0
    %275 = vxpose.xlu0.b32.start [1/16] %v213, 128
    %276 = vxpose.xlu0.b32.cont [2/16] %v216, 128
    %277 = vxpose.xlu0.b32.cont [3/16] %v221, 128
    %278 = vxpose.xlu0.b32.cont [4/16] %v224, 128
    %279 = vxpose.xlu0.b32.cont [5/16] %v229, 128
    %280 = vxpose.xlu0.b32.cont [6/16] %v232, 128
    %281 = vxpose.xlu0.b32.cont [7/16] %v237, 128
    %282 = vxpose.xlu0.b32.cont [8/16] %v240, 128
    %283 = vxpose.xlu0.b32.cont [9/16] %v245, 128
    %284 = vxpose.xlu0.b32.cont [10/16] %v248, 128
    %285 = vxpose.xlu0.b32.cont [11/16] %v253, 128
    %286 = vxpose.xlu0.b32.cont [12/16] %v256, 128
    %287 = vxpose.xlu0.b32.cont [13/16] %v261, 128
    %288 = vxpose.xlu0.b32.cont [14/16] %v264, 128
    %289 = vxpose.xlu0.b32.cont [15/16] %v269, 128
    %290 = vxpose.xlu0.b32.end [16/16] %v272, 128
    %v291 = vpop.trf.xlu0
    %v292 = vpop.trf.xlu0
    %v293 = vpop.trf.xlu0
    %v294 = vpop.trf.xlu0
    %v295 = vpop.trf.xlu0
    %v296 = vpop.trf.xlu0
    %v297 = vpop.trf.xlu0
    %v298 = vpop.trf.xlu0
    %v299 = vpop.trf.xlu0
    %v300 = vpop.trf.xlu0
    %v301 = vpop.trf.xlu0
    %v302 = vpop.trf.xlu0
    %v303 = vpop.trf.xlu0
    %v304 = vpop.trf.xlu0
    %v305 = vpop.trf.xlu0
    %v306 = vpop.trf.xlu0
    %v307 = vadd.f32 %v213, %v291
    %v308 = vadd.f32 %v216, %v292
    %v309 = vadd.f32 %v221, %v293
    %v310 = vadd.f32 %v224, %v294
    %v311 = vadd.f32 %v229, %v295
    %v312 = vadd.f32 %v232, %v296
    %v313 = vadd.f32 %v237, %v297
    %v314 = vadd.f32 %v240, %v298
    %v315 = vadd.f32 %v245, %v299
    %v316 = vadd.f32 %v248, %v300
    %v317 = vadd.f32 %v253, %v301
    %v318 = vadd.f32 %v256, %v302
    %v319 = vadd.f32 %v261, %v303
    %v320 = vadd.f32 %v264, %v304
    %v321 = vadd.f32 %v269, %v305
    %v322 = vadd.f32 %v272, %v306
    %vm323 = vcmp.gt.f32.partialorder %v307, 0.0
    %vm324 = vcmp.gt.f32.partialorder %v308, 0.0
    %vm325 = vcmp.gt.f32.partialorder %v309, 0.0
    %vm326 = vcmp.gt.f32.partialorder %v310, 0.0
    %vm327 = vcmp.gt.f32.partialorder %v311, 0.0
    %vm328 = vcmp.gt.f32.partialorder %v312, 0.0
    %vm329 = vcmp.gt.f32.partialorder %v313, 0.0
    %vm330 = vcmp.gt.f32.partialorder %v314, 0.0
    %vm331 = vcmp.gt.f32.partialorder %v315, 0.0
    %vm332 = vcmp.gt.f32.partialorder %v316, 0.0
    %vm333 = vcmp.gt.f32.partialorder %v317, 0.0
    %vm334 = vcmp.gt.f32.partialorder %v318, 0.0
    %vm335 = vcmp.gt.f32.partialorder %v319, 0.0
    %vm336 = vcmp.gt.f32.partialorder %v320, 0.0
    %vm337 = vcmp.gt.f32.partialorder %v321, 0.0
    %vm338 = vcmp.gt.f32.partialorder %v322, 0.0
    %v339 = vsel %vm323, 1, 0
    %v340 = vsel %vm324, 1, 0
    %v341 = vsel %vm325, 1, 0
    %v342 = vsel %vm326, 1, 0
    %v343 = vsel %vm327, 1, 0
    %v344 = vsel %vm328, 1, 0
    %v345 = vsel %vm329, 1, 0
    %v346 = vsel %vm330, 1, 0
    %v347 = vsel %vm331, 1, 0
    %v348 = vsel %vm332, 1, 0
    %v349 = vsel %vm333, 1, 0
    %v350 = vsel %vm334, 1, 0
    %v351 = vsel %vm335, 1, 0
    %v352 = vsel %vm336, 1, 0
    %v353 = vsel %vm337, 1, 0
    %v354 = vsel %vm338, 1, 0
    %v355 = vcvt.s32.f32 %v339
    %v356 = vcvt.s32.f32 %v340
    %v357 = vcvt.s32.f32 %v341
    %v358 = vcvt.s32.f32 %v342
    %v359 = vcvt.s32.f32 %v343
    %v360 = vcvt.s32.f32 %v344
    %v361 = vcvt.s32.f32 %v345
    %v362 = vcvt.s32.f32 %v346
    %v363 = vcvt.s32.f32 %v347
    %v364 = vcvt.s32.f32 %v348
    %v365 = vcvt.s32.f32 %v349
    %v366 = vcvt.s32.f32 %v350
    %v367 = vcvt.s32.f32 %v351
    %v368 = vcvt.s32.f32 %v352
    %v369 = vcvt.s32.f32 %v353
    %v370 = vcvt.s32.f32 %v354
    %v371 = vadd.f32 %v355, %v356
    %v372 = vadd.f32 %v371, %v357
    %v373 = vadd.f32 %v372, %v358
    %v374 = vadd.f32 %v373, %v359
    %v375 = vadd.f32 %v374, %v360
    %v376 = vadd.f32 %v375, %v361
    %v377 = vadd.f32 %v376, %v362
    %v378 = vadd.f32 %v377, %v363
    %v379 = vadd.f32 %v378, %v364
    %v380 = vadd.f32 %v379, %v365
    %v381 = vadd.f32 %v380, %v366
    %v382 = vadd.f32 %v381, %v367
    %v383 = vadd.f32 %v382, %v368
    %v384 = vadd.f32 %v383, %v369
    %v385 = vadd.f32 %v384, %v370
    %v386 = vrot.slane %v385, 4
    %v387 = vadd.f32 %v385, %v386
    %v388 = vrot.slane %v387, 2
    %v389 = vadd.f32 %v387, %v388
    %v390 = vrot.slane %v389, 1
    %v391 = vadd.f32 %v389, %v390
    %v392 = vadd.f32 %v391, 1e-12
    %v393 = vrsqrt.pop %v392
    %v394 = vmul.f32 %v355, %v393
    %v395 = vmul.f32 %v356, %v393
    %v396 = vmul.f32 %v357, %v393
    %v397 = vmul.f32 %v358, %v393
    %v398 = vmul.f32 %v359, %v393
    %v399 = vmul.f32 %v360, %v393
    %v400 = vmul.f32 %v361, %v393
    %v401 = vmul.f32 %v362, %v393
    %v402 = vmul.f32 %v363, %v393
    %v403 = vmul.f32 %v364, %v393
    %v404 = vmul.f32 %v365, %v393
    %v405 = vmul.f32 %v366, %v393
    %v406 = vmul.f32 %v367, %v393
    %v407 = vmul.f32 %v368, %v393
    %v408 = vmul.f32 %v369, %v393
    %v409 = vmul.f32 %v370, %v393
    %v410 = vld [vmem:[#allocation5] sm:$0xff]
    %v411 = vld [vmem:[#allocation5 + $0x8] sm:$0xff]
    %v412 = vld [vmem:[#allocation5 + $0x10] sm:$0xff]
    %v413 = vld [vmem:[#allocation5 + $0x18] sm:$0xff]
    %v414 = vmul.f32 %v410, %v393
    %v415 = vmul.f32 %v411, %v393
    %v416 = vmul.f32 %v412, %v393
    %v417 = vmul.f32 %v413, %v393
    %418 = vmatprep.subr.mxu0 0.0
    %419 = vmatpush1.msra.mxu0 %v394
    %420 = vmatprep.subr.mxu0 0.0
    %421 = vmatpush1.msra.mxu0 %v395
    %422 = vmatprep.subr.mxu0 0.0
    %423 = vmatpush1.msra.mxu0 %v396
    %424 = vmatprep.subr.mxu0 0.0
    %425 = vmatpush1.msra.mxu0 %v397
    %426 = vmatprep.subr.mxu0 0.0
    %427 = vmatpush1.msra.mxu0 %v398
    %428 = vmatprep.subr.mxu0 0.0
    %429 = vmatpush1.msra.mxu0 %v399
    %430 = vmatprep.subr.mxu0 0.0
    %431 = vmatpush1.msra.mxu0 %v400
    %432 = vmatprep.subr.mxu0 0.0
    %433 = vmatpush1.msra.mxu0 %v401
    %434 = vmatprep.subr.mxu0 0.0
    %435 = vmatpush1.msra.mxu0 %v402
    %436 = vmatprep.subr.mxu0 0.0
    %437 = vmatpush1.msra.mxu0 %v403
    %438 = vmatprep.subr.mxu0 0.0
    %439 = vmatpush1.msra.mxu0 %v404
    %440 = vmatprep.subr.mxu0 0.0
    %441 = vmatpush1.msra.mxu0 %v405
    %442 = vmatprep.subr.mxu0 0.0
    %443 = vmatpush1.msra.mxu0 %v406
    %444 = vmatprep.subr.mxu0 0.0
    %445 = vmatpush1.msra.mxu0 %v407
    %446 = vmatprep.subr.mxu0 0.0
    %447 = vmatpush1.msra.mxu0 %v408
    %448 = vmatprep.subr.mxu0 0.0
    %449 = vmatpush1.msra.mxu0 %v409
    %450 = vmatprep.subr.mxu0 0.0
    %451 = vmatpush1.msra.mxu0 0.0
    %452 = vmatprep.subr.mxu0 0.0
    %453 = vmatpush1.msra.mxu0 0.0
    %454 = vmatprep.subr.mxu0 0.0
    %455 = vmatpush1.msra.mxu0 0.0
    %456 = vmatprep.subr.mxu0 0.0
    %457 = vmatpush1.msra.mxu0 0.0
    %458 = vmatprep.subr.mxu0 0.0
    %459 = vmatpush1.msra.mxu0 0.0
    %460 = vmatprep.subr.mxu0 0.0
    %461 = vmatpush1.msra.mxu0 0.0
    %462 = vmatprep.subr.mxu0 0.0
    %463 = vmatpush1.msra.mxu0 0.0
    %464 = vmatprep.subr.mxu0 0.0
    %465 = vmatpush1.msra.mxu0 0.0
    %466 = vmatprep.subr.mxu0 0.0
    %467 = vmatpush1.msra.mxu0 0.0
    %468 = vmatprep.subr.mxu0 0.0
    %469 = vmatpush1.msra.mxu0 0.0
    %470 = vmatprep.subr.mxu0 0.0
    %471 = vmatpush1.msra.mxu0 0.0
    %472 = vmatprep.subr.mxu0 0.0
    %473 = vmatpush1.msra.mxu0 0.0
    %474 = vmatprep.subr.mxu0 0.0
    %475 = vmatpush1.msra.mxu0 0.0
    %476 = vmatprep.subr.mxu0 0.0
    %477 = vmatpush1.msra.mxu0 0.0
    %478 = vmatprep.subr.mxu0 0.0
    %479 = vmatpush1.msra.mxu0 0.0
    %480 = vmatprep.subr.mxu0 0.0
    %481 = vmatpush1.msra.mxu0 0.0
    %482 = vmatprep.mubr.f32.mxu0 0.0
    %483 = vmatmul.mubr.f32.gmra.mrb[0].mxu0 %v414
    %v484 = vpop.f32.mrb[0].mxu0
    %v485 = vadd.f32 0.0, %v484
    %v486 = vpop.f32.mrb[0].mxu0
    %487 = vmatprep.mubr.f32.mxu0 0.0
    %488 = vmatmul.mubr.f32.gmra.mrb[0].mxu0 %v415
    %v489 = vpop.f32.mrb[0].mxu0
    %v490 = vadd.f32 0.0, %v489
    %v491 = vpop.f32.mrb[0].mxu0
    %492 = vmatprep.mubr.f32.mxu0 0.0
    %493 = vmatmul.mubr.f32.gmra.mrb[0].mxu0 %v416
    %v494 = vpop.f32.mrb[0].mxu0
    %v495 = vadd.f32 0.0, %v494
    %v496 = vpop.f32.mrb[0].mxu0
    %497 = vmatprep.mubr.f32.mxu0 0.0
    %498 = vmatmul.mubr.f32.gmra.mrb[0].mxu0 %v417
    %v499 = vpop.f32.mrb[0].mxu0
    %v500 = vadd.f32 0.0, %v499
    %v501 = vpop.f32.mrb[0].mxu0
    %502 = vdwg.mxu0
    %v503 = vadd.f32 %v410, %v485
    %v504 = vadd.f32 %v411, %v490
    %v505 = vadd.f32 %v412, %v495
    %v506 = vadd.f32 %v413, %v500
    %v507 = vmul.f32 %v485, %v393
    %v508 = vmul.f32 %v490, %v393
    %v509 = vmul.f32 %v495, %v393
    %v510 = vmul.f32 %v500, %v393
    %511 = vmatprep.subr.mxu0 0.0
    %512 = vmatpush1.msra.mxu0 %v394
    %513 = vmatprep.subr.mxu0 0.0
    %514 = vmatpush1.msra.mxu0 %v395
    %515 = vmatprep.subr.mxu0 0.0
    %516 = vmatpush1.msra.mxu0 %v396
    %517 = vmatprep.subr.mxu0 0.0
    %518 = vmatpush1.msra.mxu0 %v397
    %519 = vmatprep.subr.mxu0 0.0
    %520 = vmatpush1.msra.mxu0 %v398
    %521 = vmatprep.subr.mxu0 0.0
    %522 = vmatpush1.msra.mxu0 %v399
    %523 = vmatprep.subr.mxu0 0.0
    %524 = vmatpush1.msra.mxu0 %v400
    %525 = vmatprep.subr.mxu0 0.0
    %526 = vmatpush1.msra.mxu0 %v401
    %527 = vmatprep.subr.mxu0 0.0
    %528 = vmatpush1.msra.mxu0 %v402
    %529 = vmatprep.subr.mxu0 0.0
    %530 = vmatpush1.msra.mxu0 %v403
    %531 = vmatprep.subr.mxu0 0.0
    %532 = vmatpush1.msra.mxu0 %v404
    %533 = vmatprep.subr.mxu0 0.0
    %534 = vmatpush1.msra.mxu0 %v405
    %535 = vmatprep.subr.mxu0 0.0
    %536 = vmatpush1.msra.mxu0 %v406
    %537 = vmatprep.subr.mxu0 0.0
    %538 = vmatpush1.msra.mxu0 %v407
    %539 = vmatprep.subr.mxu0 0.0
    %540 = vmatpush1.msra.mxu0 %v408
    %541 = vmatprep.subr.mxu0 0.0
    %542 = vmatpush1.msra.mxu0 %v409
    %543 = vmatprep.subr.mxu0 0.0
    %544 = vmatpush1.msra.mxu0 0.0
    %545 = vmatprep.subr.mxu0 0.0
    %546 = vmatpush1.msra.mxu0 0.0
    %547 = vmatprep.subr.mxu0 0.0
    %548 = vmatpush1.msra.mxu0 0.0
    %549 = vmatprep.subr.mxu0 0.0
    %550 = vmatpush1.msra.mxu0 0.0
    %551 = vmatprep.subr.mxu0 0.0
    %552 = vmatpush1.msra.mxu0 0.0
    %553 = vmatprep.subr.mxu0 0.0
    %554 = vmatpush1.msra.mxu0 0.0
    %555 = vmatprep.subr.mxu0 0.0
    %556 = vmatpush1.msra.mxu0 0.0
    %557 = vmatprep.subr.mxu0 0.0
    %558 = vmatpush1.msra.mxu0 0.0
    %559 = vmatprep.subr.mxu0 0.0
    %560 = vmatpush1.msra.mxu0 0.0
    %561 = vmatprep.subr.mxu0 0.0
    %562 = vmatpush1.msra.mxu0 0.0
    %563 = vmatprep.subr.mxu0 0.0
    %564 = vmatpush1.msra.mxu0 0.0
    %565 = vmatprep.subr.mxu0 0.0
    %566 = vmatpush1.msra.mxu0 0.0
    %567 = vmatprep.subr.mxu0 0.0
    %568 = vmatpush1.msra.mxu0 0.0
    %569 = vmatprep.subr.mxu0 0.0
    %570 = vmatpush1.msra.mxu0 0.0
    %571 = vmatprep.subr.mxu0 0.0
    %572 = vmatpush1.msra.mxu0 0.0
    %573 = vmatprep.subr.mxu0 0.0
    %574 = vmatpush1.msra.mxu0 0.0
    %575 = vmatprep.mubr.f32.mxu0 0.0
    %576 = vmatmul.mubr.f32.gmra.mrb[0].mxu0 %v507
    %v577 = vpop.f32.mrb[0].mxu0
    %v578 = vadd.f32 0.0, %v577
    %v579 = vpop.f32.mrb[0].mxu0
    %580 = vmatprep.mubr.f32.mxu0 0.0
    %581 = vmatmul.mubr.f32.gmra.mrb[0].mxu0 %v508
    %v582 = vpop.f32.mrb[0].mxu0
    %v583 = vadd.f32 0.0, %v582
    %v584 = vpop.f32.mrb[0].mxu0
    %585 = vmatprep.mubr.f32.mxu0 0.0
    %586 = vmatmul.mubr.f32.gmra.mrb[0].mxu0 %v509
    %v587 = vpop.f32.mrb[0].mxu0
    %v588 = vadd.f32 0.0, %v587
    %v589 = vpop.f32.mrb[0].mxu0
    %590 = vmatprep.mubr.f32.mxu0 0.0
    %591 = vmatmul.mubr.f32.gmra.mrb[0].mxu0 %v510
    %v592 = vpop.f32.mrb[0].mxu0
    %v593 = vadd.f32 0.0, %v592
    %v594 = vpop.f32.mrb[0].mxu0
    %595 = vdwg.mxu0
    %v596 = vadd.f32 %v503, %v578
    %v597 = vadd.f32 %v504, %v583
    %v598 = vadd.f32 %v505, %v588
    %v599 = vadd.f32 %v506, %v593
    %v600 = vmul.f32 %v596, 0.33333334
    %v601 = vmul.f32 %v597, 0.33333334
    %v602 = vmul.f32 %v598, 0.33333334
    %v603 = vmul.f32 %v599, 0.33333334
    %604 = vst [vmem:[#allocation7] sm:$0xff] %v600
    %605 = vst [vmem:[#allocation7 + $0x8] sm:$0xff] %v601
    %606 = vst [vmem:[#allocation7 + $0x10] sm:$0xff] %v602
    %607 = vst [vmem:[#allocation7 + $0x18] sm:$0xff] %v603
    // Predicated region
    $region18: #{tpu_custom_call.1} parent=1 // pred_check
      _
    $region19: #{tpu_custom_call.1} parent=1 // pred_check_branch
      %609 = sbr.rel (0) target = $region21
    $region20: #{tpu_custom_call.1} parent=1 // pred_region
      %s611 = ssub.s32 512, 512
      %612 = vsyncadd [#allocation4], %s611
      %s613 = sshll.u32 [#allocation7], 4
      %s614 = int_to_ptr.vmem [resolvable:$true] %s613
      %619 = dma.vmem_to_hbm [thread:$0]  %s614, 512, %s2, [#allocation4], 128, 128, 8
    $region21: #{tpu_custom_call.1} parent=1 // pred_fallthru
      _
    // Predicated region
    $region22: #{tpu_custom_call.1} parent=1 // pred_check
      _
    $region23: #{tpu_custom_call.1} parent=1 // pred_check_branch
      %621 = sbr.rel (0) target = $region25
    $region24: #{tpu_custom_call.1} parent=1 // pred_region
      %622 = dma.done [#allocation4], 512
    $region25: #{tpu_custom_call.1} parent=1 // pred_fallthru
      _
    %623 = vsyncpa [#allocation3], 1
    %624 = vsyncpa [#allocation6], 1
    %625 = vsyncpa [#allocation4], 1

</llo_original>
